<compile_context>
chip_gen: v7x
topology: tpu7x:2x2x1
jax: 0.10.0
libtpu: 0.0.40
codegen_flags: <defaults>
</compile_context>

<pallas_src>
import jax
import jax.numpy as jnp
from jax import lax
from jax.experimental import pallas as pl
from jax.experimental.pallas import tpu as pltpu


def _sublane_multiple(dtype) -> int:
    # Second-minor tiling multiple: 8 for 32-bit, 16 for bf16, 32 for int8.
    return 8 * max(1, 4 // jnp.dtype(dtype).itemsize)


def basic_conv1d(x, w, *, batch_block=None, vmem_budget_bytes=12 * 1024 * 1024):
    """Conv1d, bias=False, stride=1, no padding.

    Args:
      x: (N, C_in, L)
      w: (C_out, C_in, K)
    Returns:
      (N, C_out, L_out) with L_out = L - K + 1
    """
    N, C_in, L = x.shape
    C_out, C_in_w, K = w.shape
    assert C_in == C_in_w
    L_out = L - K + 1
    assert L_out >= 1

    # Keep a single dtype on the MXU path (avoid silent promotion).
    w = w.astype(x.dtype)
    itemsize = jnp.dtype(x.dtype).itemsize

    # ---- fused, sublane-aligned weight: (C_out, K*C_in_pad), k-major / ci-minor ---
    sub = _sublane_multiple(x.dtype)
    C_in_pad = -(-C_in // sub) * sub
    F = K * C_in_pad
    w_t = jnp.transpose(w, (0, 2, 1))                       # (C_out, K, C_in)
    if C_in_pad != C_in:
        w_t = jnp.pad(w_t, ((0, 0), (0, 0), (0, C_in_pad - C_in)))
    w_fused = w_t.reshape(C_out, F)                         # tiny; negligible XLA work

    # ---- choose B = batch elements per grid step from a VMEM budget ---------------
    if batch_block is None:
        per_b = (2 * C_in * L * itemsize                    # x block (double-buffered)
                 + 2 * C_out * L_out * itemsize             # out block (double-buffered)
                 + F * L_out * itemsize                      # in-kernel rhs temporary
                 + C_out * F * itemsize                      # broadcast weight copy
                 + C_out * L_out * 4)                        # f32 dot result
        B = max(1, min(N, vmem_budget_bytes // max(1, per_b)))
        # Only v7x-style dual-TensorCore chips need >=2 parallel grid blocks.
        try:
            kind = jax.devices()[0].device_kind.lower()
        except Exception:
            kind = ""
        if "v7" in kind and N >= 2:
            B = min(B, -(-N // 2))
    else:
        B = max(1, min(N, int(batch_block)))
    G = -(-N // B)                                          # grid steps (ceil)

    # ---- kernel --------------------------------------------------------------------
    def kernel(x_ref, w_ref, o_ref):
        # x_ref: (B, C_in, L)   w_ref: (C_out, F)   o_ref: (B, C_out, L_out)
        xb = x_ref[...]
        pieces = []
        if C_in_pad != C_in:
            zpad = jnp.zeros((B, C_in_pad - C_in, L_out), dtype=xb.dtype)
        for k in range(K):
            pieces.append(xb[:, :, k:k + L_out])            # (B, C_in, L_out)
            if C_in_pad != C_in:
                pieces.append(zpad)                         # sublane-align next tap
        rhs = jnp.concatenate(pieces, axis=1) if len(pieces) > 1 else pieces[0]
        # One batched MXU contraction for the whole block (no per-batch unroll).
        wf = jnp.broadcast_to(w_ref[...], (B, C_out, F))
        out = jnp.einsum("bof,bfl->bol", wf, rhs,
                         preferred_element_type=jnp.float32)
        o_ref[...] = out.astype(o_ref.dtype)

    out = pl.pallas_call(
        kernel,
        out_shape=jax.ShapeDtypeStruct((N, C_out, L_out), x.dtype),
        grid_spec=pltpu.PrefetchScalarGridSpec(
            num_scalar_prefetch=0,
            grid=(G,),
            in_specs=[
                pl.BlockSpec((B, C_in, L), lambda g: (g, 0, 0)),
                pl.BlockSpec((C_out, F), lambda g: (0, 0)),
            ],
            out_specs=pl.BlockSpec((B, C_out, L_out), lambda g: (g, 0, 0)),
        ),
        compiler_params=pltpu.CompilerParams(
            dimension_semantics=("parallel",),
            vmem_limit_bytes=32 * 1024 * 1024,
        ),
    )(x, w_fused)
    return out


if __name__ == "__main__":
    # Small shapes consistent with the module's forward: (N, C_in, L)
    N, C_in, C_out, L, K = 2, 4, 8, 16, 3

    key = jax.random.PRNGKey(0)
    kx, kw = jax.random.split(key)
    x = jax.random.normal(kx, (N, C_in, L), dtype=jnp.float32)
    # Deterministic "parameter" init (synthetic, no checkpoint load).
    w = jax.random.normal(kw, (C_out, C_in, K), dtype=jnp.float32) * 0.1

    out = basic_conv1d(x, w)
    out = jax.block_until_ready(out)

    # Reference: XLA conv1d with the same NCL / OIK semantics as nn.Conv1d.
    ref = lax.conv_general_dilated(
        x, w, window_strides=(1,), padding="VALID",
        dimension_numbers=("NCH", "OIH", "NCH"))
    assert out.shape == (N, C_out, L - K + 1)
    assert jnp.allclose(out, ref, atol=1e-4, rtol=1e-4)

    # Exercise the in-kernel batch-tail path (N not divisible by B): no wrapper pad.
    N2 = 3
    x2 = jax.random.normal(jax.random.PRNGKey(1), (N2, C_in, L), dtype=jnp.float32)
    out2 = jax.block_until_ready(basic_conv1d(x2, w, batch_block=2))
    ref2 = lax.conv_general_dilated(
        x2, w, window_strides=(1,), padding="VALID",
        dimension_numbers=("NCH", "OIH", "NCH"))
    assert out2.shape == (N2, C_out, L - K + 1)
    assert jnp.allclose(out2, ref2, atol=1e-4, rtol=1e-4)

    print("KERNEL_OK")
</pallas_src>

<mosaic_0001>
module attributes {stable_mosaic.version = 11 : i64} {
  func.func @kernel(%arg0: i32, %arg1: memref<2x4x16xf32, #tpu.memory_space<vmem>>, %arg2: memref<8x24xf32, #tpu.memory_space<vmem>>, %arg3: memref<2x8x14xf32, #tpu.memory_space<vmem>>) attributes {dimension_semantics = [#tpu.dimension_semantics<parallel>], iteration_bounds = array<i64: 1>, scalar_prefetch = 0 : i64, scratch_operands = 0 : i64, tpu.core_type = #tpu.core_type<tc>, window_params = [{transform_indices = @transform_0, window_bounds = array<i64: 2, 4, 16>}, {pipeline_mode = #tpu.pipeline_mode<synchronous>, transform_indices = @transform_1, window_bounds = array<i64: 8, 24>}, {transform_indices = @transform_2, window_bounds = array<i64: 2, 8, 14>}]} {
    %c0 = arith.constant 0 : index
    %c0_0 = arith.constant 0 : index
    %c0_1 = arith.constant 0 : index
    %0 = vector.load %arg1[%c0, %c0_0, %c0_1] : memref<2x4x16xf32, #tpu.memory_space<vmem>>, vector<2x4x16xf32>
    %cst = arith.constant 0.000000e+00 : f32
    %1 = vector.broadcast %cst : f32 to vector<2x4x14xf32>
    %2 = vector.extract_strided_slice %0 {offsets = [0, 0, 0], sizes = [2, 4, 14], strides = [1, 1, 1]} : vector<2x4x16xf32> to vector<2x4x14xf32>
    %3 = vector.extract_strided_slice %0 {offsets = [0, 0, 1], sizes = [2, 4, 14], strides = [1, 1, 1]} : vector<2x4x16xf32> to vector<2x4x14xf32>
    %4 = vector.extract_strided_slice %0 {offsets = [0, 0, 2], sizes = [2, 4, 14], strides = [1, 1, 1]} : vector<2x4x16xf32> to vector<2x4x14xf32>
    %5 = tpu.concatenate %2, %1, %3, %1, %4, %1 in 1 : vector<2x4x14xf32>, vector<2x4x14xf32>, vector<2x4x14xf32>, vector<2x4x14xf32>, vector<2x4x14xf32>, vector<2x4x14xf32> -> vector<2x24x14xf32>
    %c0_2 = arith.constant 0 : index
    %c0_3 = arith.constant 0 : index
    %6 = vector.load %arg2[%c0_2, %c0_3] : memref<8x24xf32, #tpu.memory_space<vmem>>, vector<8x24xf32>
    %7 = vector.shape_cast %6 : vector<8x24xf32> to vector<1x8x24xf32>
    %8 = vector.broadcast %7 : vector<1x8x24xf32> to vector<2x8x24xf32>
    "tpu.trace_start"() <{level = 10 : i32, message = "bof,bfl->bol"}> : () -> ()
    %cst_4 = arith.constant dense<0.000000e+00> : vector<2x8x14xf32>
    %9 = tpu.matmul %8, %5, %cst_4 {dimension_numbers = #tpu.dot_dimension_numbers<[2], [1], [1], [2], [0, 0, 0, 1, 1, 2], [0], [0]>} : vector<2x8x24xf32>, vector<2x24x14xf32>, vector<2x8x14xf32> -> vector<2x8x14xf32>
    "tpu.trace_stop"() : () -> ()
    %c0_5 = arith.constant 0 : index
    %c0_6 = arith.constant 0 : index
    %c0_7 = arith.constant 0 : index
    %10 = vector.load %arg3[%c0_5, %c0_6, %c0_7] : memref<2x8x14xf32, #tpu.memory_space<vmem>>, vector<2x8x14xf32>
    tpu.vector_store %arg3[%c0_5, %c0_6, %c0_7], %9 {strides = array<i32>} : memref<2x8x14xf32, #tpu.memory_space<vmem>>, vector<2x8x14xf32>,
    return
  }
  func.func @transform_0(%arg0: i32) -> (i32, i32, i32) {
    %c0_i32 = arith.constant 0 : i32
    %c0_i32_0 = arith.constant 0 : i32
    %c0_i32_1 = arith.constant 0 : i32
    return %arg0, %c0_i32, %c0_i32_0 : i32, i32, i32
  }
  func.func @transform_1(%arg0: i32) -> (i32, i32) {
    %c0_i32 = arith.constant 0 : i32
    %c0_i32_0 = arith.constant 0 : i32
    %c0_i32_1 = arith.constant 0 : i32
    return %c0_i32, %c0_i32_0 : i32, i32
  }
  func.func @transform_2(%arg0: i32) -> (i32, i32, i32) {
    %c0_i32 = arith.constant 0 : i32
    %c0_i32_0 = arith.constant 0 : i32
    %c0_i32_1 = arith.constant 0 : i32
    return %arg0, %c0_i32, %c0_i32_0 : i32, i32, i32
  }
}

</mosaic_0001>

<llo_original>
// kernel: tpu_custom_call.1
$region0: #{tpu_custom_call.1}
  #allocation0 [shape = 'u32[]', space=smem, size = 0x4, offset = 0x4, fixed_abs, tag = 'smem constant byte address 0x4 - core index']
  #allocation1 [shape = 'u32[144,128]{1,0:T(1,128)}', space=vmem, size = 0x12000, scoped, tag = 'internal scratch']
  %s0 = inlined_call_operand.hbm [shape: f32[2,4,16], index: 0, kind: input, shape index: {}]
  %s1 = inlined_call_operand.hbm [shape: f32[8,24], index: 1, kind: input, shape index: {}]
  %s2 = inlined_call_operand.hbm [shape: f32[2,8,14], index: 2, kind: output, shape index: {}]
  %s3 = sld [smem:[#allocation0]]
  $region26: #{tpu_custom_call.1} parent=0
    _
  %s5 = ssub.s32 1, %s3
  %s6 = scalar_select 0, %s5, %s3
  $region1: #{tpu_custom_call.1} parent=0
    #allocation2 [shape = 'u8[4096]{0}', space=vmem, size = 0x1000, scoped, tag = 'input window, operand 0, single buffered']
    #allocation3 [shape = 's32[1]{0}', space=sflag, size = 0x4, scoped, tag = 'scoped memory for tpu_custom_call.1']
    #allocation4 [shape = 's32[1]{0}', space=sflag, size = 0x4, scoped, tag = 'scoped memory for tpu_custom_call.1']
    #allocation5 [shape = 'u8[4096]{0}', space=vmem, size = 0x1000, scoped, tag = 'input window, operand 1, single buffered']
    #allocation6 [shape = 's32[1]{0}', space=sflag, size = 0x4, scoped, tag = 'scoped memory for tpu_custom_call.1']
    #allocation7 [shape = 'u8[8192]{0}', space=vmem, size = 0x2000, scoped, tag = 'output window, operand 0, single buffered']
    %7 = vsyncpa [#allocation3], 0
    %8 = vsyncpa [#allocation6], 0
    %9 = vsyncpa [#allocation4], 0
    // Predicated region
    $region2: #{tpu_custom_call.1} parent=1 // pred_check
      _
    $region3: #{tpu_custom_call.1} parent=1 // pred_check_branch
      %11 = sbr.rel (0) target = $region5
    $region4: #{tpu_custom_call.1} parent=1 // pred_region
      %s13 = ssub.s32 128, 128
      %14 = vsyncadd [#allocation3], %s13
      %s15 = sshll.u32 [#allocation2], 4
      %s16 = int_to_ptr.vmem [resolvable:$true] %s15
      %21 = dma.hbm_to_vmem [thread:$0]  %s0, 128, %s16, [#allocation3], 64, 64, 4
    $region5: #{tpu_custom_call.1} parent=1 // pred_fallthru
      _
    // Predicated region
    $region6: #{tpu_custom_call.1} parent=1 // pred_check
      _
    $region7: #{tpu_custom_call.1} parent=1 // pred_check_branch
      %23 = sbr.rel (0) target = $region9
    $region8: #{tpu_custom_call.1} parent=1 // pred_region
      %s25 = ssub.s32 128, 128
      %26 = vsyncadd [#allocation6], %s25
      %s28 = sshll.u32 [#allocation5], 4
      %s29 = int_to_ptr.vmem [resolvable:$true] %s28
      %31 = dma.hbm_to_vmem [thread:$0]  %s1, 128, %s29, [#allocation6]
    $region9: #{tpu_custom_call.1} parent=1 // pred_fallthru
      _
    // Predicated region
    $region10: #{tpu_custom_call.1} parent=1 // pred_check
      _
    $region11: #{tpu_custom_call.1} parent=1 // pred_check_branch
      %33 = sbr.rel (0) target = $region13
    $region12: #{tpu_custom_call.1} parent=1 // pred_region
      %34 = dma.done [#allocation3], 128
    $region13: #{tpu_custom_call.1} parent=1 // pred_fallthru
      _
    // Predicated region
    $region14: #{tpu_custom_call.1} parent=1 // pred_check
      _
    $region15: #{tpu_custom_call.1} parent=1 // pred_check_branch
      %36 = sbr.rel (0) target = $region17
    $region16: #{tpu_custom_call.1} parent=1 // pred_region
      %37 = dma.done [#allocation6], 128
    $region17: #{tpu_custom_call.1} parent=1 // pred_fallthru
      _
    %v38 = vld [vmem:[#allocation2] sm:$0xf]
    %v39 = vld [vmem:[#allocation2 + $0x4] sm:$0xf]
    %42 = vrot.lane.b32.xlu0 %v38, 127
    %v43 = vpop.permute.xlu0 %42
    %44 = vrot.lane.b32.xlu0 %v39, 127
    %v45 = vpop.permute.xlu0 %44
    %48 = vrot.lane.b32.xlu0 %v38, 126
    %v49 = vpop.permute.xlu0 %48
    %50 = vrot.lane.b32.xlu0 %v39, 126
    %v51 = vpop.permute.xlu0 %50
    %vm54 = vcmask 1043456
    %v55 = vsel %vm54, %v38, 0.0
    %v56 = vsel %vm54, %v39, 0.0
    %v57 = vsel %vm54, %v43, 0.0
    %v58 = vsel %vm54, %v45, 0.0
    %v59 = vsel %vm54, %v49, 0.0
    %v60 = vsel %vm54, %v51, 0.0
    %v61 = vld [vmem:[#allocation5] sm:$0xff]
    %vm62 = vcmask 195584
    %v64 = vsel %vm62, %v61, 0
    %66 = vmatprep.subr.mxu0 0.0
    %67 = vmatpush1.msra.mxu0 %v55
    %68 = vmatprep.subr.mxu0 0.0
    %69 = vmatpush1.msra.mxu0 %v57
    %70 = vmatprep.subr.mxu0 0.0
    %71 = vmatpush1.msra.mxu0 %v59
    %72 = vmatprep.subr.mxu0 0.0
    %73 = vmatpush1.msra.mxu0 0.0
    %74 = vmatprep.subr.mxu0 0.0
    %75 = vmatpush1.msra.mxu0 0.0
    %76 = vmatprep.subr.mxu0 0.0
    %77 = vmatpush1.msra.mxu0 0.0
    %78 = vmatprep.subr.mxu0 0.0
    %79 = vmatpush1.msra.mxu0 0.0
    %80 = vmatprep.subr.mxu0 0.0
    %81 = vmatpush1.msra.mxu0 0.0
    %82 = vmatprep.subr.mxu0 0.0
    %83 = vmatpush1.msra.mxu0 0.0
    %84 = vmatprep.subr.mxu0 0.0
    %85 = vmatpush1.msra.mxu0 0.0
    %86 = vmatprep.subr.mxu0 0.0
    %87 = vmatpush1.msra.mxu0 0.0
    %88 = vmatprep.subr.mxu0 0.0
    %89 = vmatpush1.msra.mxu0 0.0
    %90 = vmatprep.subr.mxu0 0.0
    %91 = vmatpush1.msra.mxu0 0.0
    %92 = vmatprep.subr.mxu0 0.0
    %93 = vmatpush1.msra.mxu0 0.0
    %94 = vmatprep.subr.mxu0 0.0
    %95 = vmatpush1.msra.mxu0 0.0
    %96 = vmatprep.subr.mxu0 0.0
    %97 = vmatpush1.msra.mxu0 0.0
    %98 = vmatprep.subr.mxu0 0.0
    %99 = vmatpush1.msra.mxu0 0.0
    %100 = vmatprep.subr.mxu0 0.0
    %101 = vmatpush1.msra.mxu0 0.0
    %102 = vmatprep.subr.mxu0 0.0
    %103 = vmatpush1.msra.mxu0 0.0
    %104 = vmatprep.subr.mxu0 0.0
    %105 = vmatpush1.msra.mxu0 0.0
    %106 = vmatprep.subr.mxu0 0.0
    %107 = vmatpush1.msra.mxu0 0.0
    %108 = vmatprep.subr.mxu0 0.0
    %109 = vmatpush1.msra.mxu0 0.0
    %110 = vmatprep.subr.mxu0 0.0
    %111 = vmatpush1.msra.mxu0 0.0
    %112 = vmatprep.subr.mxu0 0.0
    %113 = vmatpush1.msra.mxu0 0.0
    %114 = vmatprep.subr.mxu0 0.0
    %115 = vmatpush1.msra.mxu0 0.0
    %116 = vmatprep.subr.mxu0 0.0
    %117 = vmatpush1.msra.mxu0 0.0
    %118 = vmatprep.subr.mxu0 0.0
    %119 = vmatpush1.msra.mxu0 0.0
    %120 = vmatprep.subr.mxu0 0.0
    %121 = vmatpush1.msra.mxu0 0.0
    %122 = vmatprep.subr.mxu0 0.0
    %123 = vmatpush1.msra.mxu0 0.0
    %124 = vmatprep.subr.mxu0 0.0
    %125 = vmatpush1.msra.mxu0 0.0
    %126 = vmatprep.subr.mxu0 0.0
    %127 = vmatpush1.msra.mxu0 0.0
    %128 = vmatprep.subr.mxu0 0.0
    %129 = vmatpush1.msra.mxu0 0.0
    %130 = vmatprep.mubr.f32.mxu0 0.0
    %131 = vmatmul.mubr.f32.gmra.mrb[0].mxu0 %v64
    %v132 = vpop.f32.mrb[0].mxu0
    %v133 = vadd.f32 0.0, %v132
    %v134 = vpop.f32.mrb[0].mxu0
    %135 = vdwg.mxu0
    %136 = vmatprep.subr.mxu0 0.0
    %137 = vmatpush1.msra.mxu0 %v56
    %138 = vmatprep.subr.mxu0 0.0
    %139 = vmatpush1.msra.mxu0 %v58
    %140 = vmatprep.subr.mxu0 0.0
    %141 = vmatpush1.msra.mxu0 %v60
    %142 = vmatprep.subr.mxu0 0.0
    %143 = vmatpush1.msra.mxu0 0.0
    %144 = vmatprep.subr.mxu0 0.0
    %145 = vmatpush1.msra.mxu0 0.0
    %146 = vmatprep.subr.mxu0 0.0
    %147 = vmatpush1.msra.mxu0 0.0
    %148 = vmatprep.subr.mxu0 0.0
    %149 = vmatpush1.msra.mxu0 0.0
    %150 = vmatprep.subr.mxu0 0.0
    %151 = vmatpush1.msra.mxu0 0.0
    %152 = vmatprep.subr.mxu0 0.0
    %153 = vmatpush1.msra.mxu0 0.0
    %154 = vmatprep.subr.mxu0 0.0
    %155 = vmatpush1.msra.mxu0 0.0
    %156 = vmatprep.subr.mxu0 0.0
    %157 = vmatpush1.msra.mxu0 0.0
    %158 = vmatprep.subr.mxu0 0.0
    %159 = vmatpush1.msra.mxu0 0.0
    %160 = vmatprep.subr.mxu0 0.0
    %161 = vmatpush1.msra.mxu0 0.0
    %162 = vmatprep.subr.mxu0 0.0
    %163 = vmatpush1.msra.mxu0 0.0
    %164 = vmatprep.subr.mxu0 0.0
    %165 = vmatpush1.msra.mxu0 0.0
    %166 = vmatprep.subr.mxu0 0.0
    %167 = vmatpush1.msra.mxu0 0.0
    %168 = vmatprep.subr.mxu0 0.0
    %169 = vmatpush1.msra.mxu0 0.0
    %170 = vmatprep.subr.mxu0 0.0
    %171 = vmatpush1.msra.mxu0 0.0
    %172 = vmatprep.subr.mxu0 0.0
    %173 = vmatpush1.msra.mxu0 0.0
    %174 = vmatprep.subr.mxu0 0.0
    %175 = vmatpush1.msra.mxu0 0.0
    %176 = vmatprep.subr.mxu0 0.0
    %177 = vmatpush1.msra.mxu0 0.0
    %178 = vmatprep.subr.mxu0 0.0
    %179 = vmatpush1.msra.mxu0 0.0
    %180 = vmatprep.subr.mxu0 0.0
    %181 = vmatpush1.msra.mxu0 0.0
    %182 = vmatprep.subr.mxu0 0.0
    %183 = vmatpush1.msra.mxu0 0.0
    %184 = vmatprep.subr.mxu0 0.0
    %185 = vmatpush1.msra.mxu0 0.0
    %186 = vmatprep.subr.mxu0 0.0
    %187 = vmatpush1.msra.mxu0 0.0
    %188 = vmatprep.subr.mxu0 0.0
    %189 = vmatpush1.msra.mxu0 0.0
    %190 = vmatprep.subr.mxu0 0.0
    %191 = vmatpush1.msra.mxu0 0.0
    %192 = vmatprep.subr.mxu0 0.0
    %193 = vmatpush1.msra.mxu0 0.0
    %194 = vmatprep.subr.mxu0 0.0
    %195 = vmatpush1.msra.mxu0 0.0
    %196 = vmatprep.subr.mxu0 0.0
    %197 = vmatpush1.msra.mxu0 0.0
    %198 = vmatprep.subr.mxu0 0.0
    %199 = vmatpush1.msra.mxu0 0.0
    %200 = vmatprep.mubr.f32.mxu0 0.0
    %201 = vmatmul.mubr.f32.gmra.mrb[0].mxu0 %v64
    %v202 = vpop.f32.mrb[0].mxu0
    %v203 = vadd.f32 0.0, %v202
    %v204 = vpop.f32.mrb[0].mxu0
    %205 = vdwg.mxu0
    %vm206 = vcmask 113664
    %207 = vst.msk [vmem:[#allocation7] sm:$0xff] %vm206, %v133
    %208 = vst.msk [vmem:[#allocation7 + $0x8] sm:$0xff] %vm206, %v203
    // Predicated region
    $region18: #{tpu_custom_call.1} parent=1 // pred_check
      _
    $region19: #{tpu_custom_call.1} parent=1 // pred_check_branch
      %210 = sbr.rel (0) target = $region21
    $region20: #{tpu_custom_call.1} parent=1 // pred_region
      %s212 = ssub.s32 256, 256
      %213 = vsyncadd [#allocation4], %s212
      %s214 = sshll.u32 [#allocation7], 4
      %s215 = int_to_ptr.vmem [resolvable:$true] %s214
      %220 = dma.vmem_to_hbm [thread:$0]  %s215, 256, %s2, [#allocation4], 128, 128, 8
    $region21: #{tpu_custom_call.1} parent=1 // pred_fallthru
      _
    // Predicated region
    $region22: #{tpu_custom_call.1} parent=1 // pred_check
      _
    $region23: #{tpu_custom_call.1} parent=1 // pred_check_branch
      %222 = sbr.rel (0) target = $region25
    $region24: #{tpu_custom_call.1} parent=1 // pred_region
      %223 = dma.done [#allocation4], 256
    $region25: #{tpu_custom_call.1} parent=1 // pred_fallthru
      _
    %224 = vsyncpa [#allocation3], 1
    %225 = vsyncpa [#allocation6], 1
    %226 = vsyncpa [#allocation4], 1

</llo_original>
